<compile_context>
chip_gen: v7x
topology: tpu7x:2x2x1
jax: 0.10.0
libtpu: 0.0.40
codegen_flags: <defaults>
</compile_context>

<pallas_src>
import functools

import jax
import jax.numpy as jnp
from jax.experimental import pallas as pl
from jax.experimental.pallas import tpu as pltpu


def _ohkm_mse_kernel(out_ref, tgt_ref, w_ref, loss_ref, acc_ref,
                     *, topk, use_target_weight, hw_total, lane_chunk):
    # out_ref / tgt_ref : (TB, J, THW) VMEM tiles (native dtype)
    # w_ref             : (TB, J)      VMEM tile
    # loss_ref          : (TB, 1)      per-sample OHKM loss (f32)
    # acc_ref           : (TB, J, lane_chunk) f32 scratch (lane-wise SSE partials)
    s = pl.program_id(1)

    @pl.when(s == 0)
    def _init():
        acc_ref[...] = jnp.zeros_like(acc_ref)

    TB, J, THW = out_ref.shape
    nchunks = THW // lane_chunk

    # Streaming path: upcast, subtract, square, lane-wise accumulate.
    part = jnp.zeros(acc_ref.shape, jnp.float32)
    for c in range(nchunks):
        lo = c * lane_chunk
        d = (out_ref[:, :, lo:lo + lane_chunk].astype(jnp.float32)
             - tgt_ref[:, :, lo:lo + lane_chunk].astype(jnp.float32))
        part = part + d * d
    acc_ref[...] += part

    @pl.when(s == pl.num_programs(1) - 1)
    def _finalize():
        # Single cross-lane reduce per batch tile.
        sse = jnp.sum(acc_ref[...], axis=-1)                      # (TB, J)
        per_joint = sse * jnp.float32(0.5 / hw_total)             # 0.5 * mean(d^2)
        if use_target_weight:
            w = w_ref[...].astype(jnp.float32)                    # (TB, J)
            per_joint = per_joint * (w * w)                       # (d*w)^2 == d^2*w^2

        # Top-k mining per sample: iteratively extract the max and mask exactly
        # one occurrence (matches torch.topk + gather + sum, ties don't change
        # the sum).
        j_iota = jax.lax.broadcasted_iota(jnp.int32, (TB, J), 1)
        NEG = jnp.float32(-1e30)
        cur = per_joint
        acc = jnp.zeros((TB, 1), jnp.float32)
        for _ in range(topk):
            m = jnp.max(cur, axis=-1, keepdims=True)              # (TB, 1)
            acc = acc + m
            hit = cur == m
            sel = jnp.min(jnp.where(hit, j_iota, J), axis=-1, keepdims=True)
            cur = jnp.where(j_iota == sel, NEG, cur)

        loss_ref[...] = acc * jnp.float32(1.0 / topk)             # (TB, 1)


def _pick_batch_tile(B, max_tb=8):
    """Largest batch tile that divides B and satisfies the (8,128) block rule
    for the (TB, J) / (TB, 1) specs: TB == B or TB % 8 == 0."""
    if B <= max_tb:
        return B
    for tb in range(max_tb - (max_tb % 8), 7, -8):
        if B % tb == 0:
            return tb
    return B


def _pick_hw_tile(HW, itemsize, tb, J, budget_bytes=8 << 20, cap=2048):
    """Largest multiple-of-128 divisor of HW (<= cap) whose double-buffered
    footprint for the two heatmap streams stays under budget_bytes."""
    cands = [t for t in range(128, min(HW, cap) + 1, 128) if HW % t == 0]
    for t in sorted(cands, reverse=True):
        if 2 * 2 * tb * J * t * itemsize <= budget_bytes:
            return t
    return HW  # fall back: full HW in one block (small spatial maps)


def joints_ohkm_mse_loss(output, target, target_weight, *,
                         use_target_weight=True, topk=8,
                         batch_tile=None, hw_tile=None):
    """output, target: (B, J, H, W); target_weight: (B, J, 1). Returns scalar f32."""
    B, J, H, W = output.shape
    HW = H * W
    out3 = output.reshape(B, J, HW)          # native dtype, no wrapper up-cast
    tgt3 = target.reshape(B, J, HW)
    w2 = target_weight.reshape(B, J)

    itemsize = jnp.dtype(out3.dtype).itemsize
    TB = batch_tile if batch_tile is not None else _pick_batch_tile(B)
    assert B % TB == 0 and (TB == B or TB % 8 == 0), (B, TB)
    THW = hw_tile if hw_tile is not None else _pick_hw_tile(HW, itemsize, TB, J)
    assert HW % THW == 0 and (THW == HW or THW % 128 == 0), (HW, THW)
    lane = 128 if (THW % 128 == 0) else THW

    kernel = functools.partial(
        _ohkm_mse_kernel, topk=topk, use_target_weight=use_target_weight,
        hw_total=HW, lane_chunk=lane)

    bytes_accessed = (out3.size * itemsize + tgt3.size * itemsize
                      + w2.size * jnp.dtype(w2.dtype).itemsize + B * 4)

    per_sample = pl.pallas_call(
        kernel,
        grid=(B // TB, HW // THW),
        in_specs=[
            pl.BlockSpec((TB, J, THW), lambda b, s: (b, 0, s)),
            pl.BlockSpec((TB, J, THW), lambda b, s: (b, 0, s)),
            pl.BlockSpec((TB, J), lambda b, s: (b, 0)),
        ],
        out_specs=pl.BlockSpec((TB, 1), lambda b, s: (b, 0)),
        out_shape=jax.ShapeDtypeStruct((B, 1), jnp.float32),
        scratch_shapes=[pltpu.VMEM((TB, J, lane), jnp.float32)],
        compiler_params=pltpu.CompilerParams(
            dimension_semantics=("parallel", "arbitrary")),
        cost_estimate=pl.CostEstimate(
            flops=3 * B * J * HW, transcendentals=0,
            bytes_accessed=int(bytes_accessed)),
    )(out3, tgt3, w2)

    # Final tiny reduction (B values) outside the kernel.
    return jnp.mean(per_sample)


def _reference_loss(output, target, target_weight, use_target_weight=True, topk=8):
    # Pure-JAX reference mirroring the PyTorch module.
    B, J = output.shape[:2]
    pred = output.reshape(B, J, -1).astype(jnp.float32)
    gt = target.reshape(B, J, -1).astype(jnp.float32)
    if use_target_weight:
        w = target_weight.reshape(B, J, 1).astype(jnp.float32)
        pred = pred * w
        gt = gt * w
    l = 0.5 * jnp.mean((pred - gt) ** 2, axis=-1)  # (B, J)
    topv = jax.lax.top_k(l, topk)[0]
    return jnp.mean(jnp.sum(topv, axis=-1) / topk)


if __name__ == "__main__":
    key = jax.random.PRNGKey(0)
    k1, k2, k3 = jax.random.split(key, 3)

    # -- Test 1: small f32, forced 2-step HW grid (exercises accumulation) --
    B, J, H, W = 2, 16, 16, 16
    output = jax.random.normal(k1, (B, J, H, W), dtype=jnp.float32)
    target = jax.random.normal(k2, (B, J, H, W), dtype=jnp.float32)
    target_weight = jax.random.uniform(k3, (B, J, 1), dtype=jnp.float32)

    loss = jax.block_until_ready(
        joints_ohkm_mse_loss(output, target, target_weight,
                             use_target_weight=True, topk=8, hw_tile=128))
    ref = jax.block_until_ready(
        _reference_loss(output, target, target_weight, True, 8))
    assert jnp.allclose(loss, ref, rtol=1e-4, atol=1e-6), (loss, ref)

    # use_target_weight=False path (default tiling).
    loss_nw = jax.block_until_ready(
        joints_ohkm_mse_loss(output, target, target_weight,
                             use_target_weight=False, topk=8))
    ref_nw = jax.block_until_ready(
        _reference_loss(output, target, target_weight, False, 8))
    assert jnp.allclose(loss_nw, ref_nw, rtol=1e-4, atol=1e-6), (loss_nw, ref_nw)

    # -- Test 2: bf16 heatmaps (no wrapper up-cast), multi batch tiles, odd J --
    B2, J2, H2, W2 = 16, 17, 16, 16
    kk = jax.random.split(jax.random.PRNGKey(1), 3)
    out_bf = jax.random.normal(kk[0], (B2, J2, H2, W2), dtype=jnp.bfloat16)
    tgt_bf = jax.random.normal(kk[1], (B2, J2, H2, W2), dtype=jnp.bfloat16)
    w_bf = jax.random.uniform(kk[2], (B2, J2, 1), dtype=jnp.float32)

    loss2 = jax.block_until_ready(
        joints_ohkm_mse_loss(out_bf, tgt_bf, w_bf,
                             use_target_weight=True, topk=8))
    ref2 = jax.block_until_ready(
        _reference_loss(out_bf.astype(jnp.float32), tgt_bf.astype(jnp.float32),
                        w_bf, True, 8))
    assert jnp.allclose(loss2, ref2, rtol=1e-4, atol=1e-6), (loss2, ref2)

    print("KERNEL_OK")
</pallas_src>

<mosaic_0001>
module attributes {stable_mosaic.version = 11 : i64} {
  func.func @_ohkm_mse_kernel(%arg0: i32, %arg1: i32, %arg2: memref<2x16x128xf32, #tpu.memory_space<vmem>>, %arg3: memref<2x16x128xf32, #tpu.memory_space<vmem>>, %arg4: memref<2x16xf32, #tpu.memory_space<vmem>>, %arg5: memref<2x1xf32, #tpu.memory_space<vmem>>, %arg6: memref<2x16x128xf32, #tpu.memory_space<vmem>>) attributes {dimension_semantics = [#tpu.dimension_semantics<parallel>, #tpu.dimension_semantics<arbitrary>], iteration_bounds = array<i64: 1, 2>, scalar_prefetch = 0 : i64, scratch_operands = 1 : i64, tpu.core_type = #tpu.core_type<tc>, window_params = [{transform_indices = @transform_0, window_bounds = array<i64: 2, 16, 128>}, {transform_indices = @transform_1, window_bounds = array<i64: 2, 16, 128>}, {transform_indices = @transform_2, window_bounds = array<i64: 2, 16>}, {transform_indices = @transform_3, window_bounds = array<i64: 2, 1>}]} {
    %c0_i32 = arith.constant 0 : i32
    %0 = arith.cmpi eq, %arg1, %c0_i32 : i32
    %1 = arith.extui %0 : i1 to i32
    %c0_i32_0 = arith.constant 0 : i32
    %2 = arith.cmpi ne, %1, %c0_i32_0 : i32
    scf.if %2 {
      %cst_13 = arith.constant 0.000000e+00 : f32
      %15 = vector.broadcast %cst_13 : f32 to vector<2x16x128xf32>
      %c0_14 = arith.constant 0 : index
      %c0_15 = arith.constant 0 : index
      %c0_16 = arith.constant 0 : index
      %16 = vector.load %arg6[%c0_14, %c0_15, %c0_16] : memref<2x16x128xf32, #tpu.memory_space<vmem>>, vector<2x16x128xf32>
      tpu.vector_store %arg6[%c0_14, %c0_15, %c0_16], %15 {strides = array<i32>} : memref<2x16x128xf32, #tpu.memory_space<vmem>>, vector<2x16x128xf32>,
    } else {
    }
    %cst = arith.constant 0.000000e+00 : f32
    %3 = vector.broadcast %cst : f32 to vector<2x16x128xf32>
    %c0 = arith.constant 0 : index
    %c0_1 = arith.constant 0 : index
    %c0_2 = arith.constant 0 : index
    %4 = vector.load %arg2[%c0, %c0_1, %c0_2] : memref<2x16x128xf32, #tpu.memory_space<vmem>>, vector<2x16x128xf32>
    %c0_3 = arith.constant 0 : index
    %c0_4 = arith.constant 0 : index
    %c0_5 = arith.constant 0 : index
    %5 = vector.load %arg3[%c0_3, %c0_4, %c0_5] : memref<2x16x128xf32, #tpu.memory_space<vmem>>, vector<2x16x128xf32>
    %6 = arith.subf %4, %5 : vector<2x16x128xf32>
    %7 = arith.mulf %6, %6 : vector<2x16x128xf32>
    %8 = arith.addf %3, %7 : vector<2x16x128xf32>
    %c0_6 = arith.constant 0 : index
    %c0_7 = arith.constant 0 : index
    %c0_8 = arith.constant 0 : index
    %9 = vector.load %arg6[%c0_6, %c0_7, %c0_8] : memref<2x16x128xf32, #tpu.memory_space<vmem>>, vector<2x16x128xf32>
    %10 = arith.addf %9, %8 : vector<2x16x128xf32>
    %c0_9 = arith.constant 0 : index
    %c0_10 = arith.constant 0 : index
    %c0_11 = arith.constant 0 : index
    %11 = vector.load %arg6[%c0_9, %c0_10, %c0_11] : memref<2x16x128xf32, #tpu.memory_space<vmem>>, vector<2x16x128xf32>
    tpu.vector_store %arg6[%c0_9, %c0_10, %c0_11], %10 {strides = array<i32>} : memref<2x16x128xf32, #tpu.memory_space<vmem>>, vector<2x16x128xf32>,
    %c1_i32 = arith.constant 1 : i32
    %12 = arith.cmpi eq, %arg1, %c1_i32 : i32
    %13 = arith.extui %12 : i1 to i32
    %c0_i32_12 = arith.constant 0 : i32
    %14 = arith.cmpi ne, %13, %c0_i32_12 : i32
    scf.if %14 {
      %c0_13 = arith.constant 0 : index
      %c0_14 = arith.constant 0 : index
      %c0_15 = arith.constant 0 : index
      %15 = vector.load %arg6[%c0_13, %c0_14, %c0_15] : memref<2x16x128xf32, #tpu.memory_space<vmem>>, vector<2x16x128xf32>
      %cst_16 = arith.constant dense<0.000000e+00> : vector<2x16xf32>
      %16 = vector.multi_reduction <add>, %15, %cst_16 [2] : vector<2x16x128xf32> to vector<2x16xf32>
      %cst_17 = arith.constant 0.001953125 : f32
      %17 = vector.broadcast %cst_17 : f32 to vector<2x16xf32>
      %18 = arith.mulf %16, %17 : vector<2x16xf32>
      %c0_18 = arith.constant 0 : index
      %c0_19 = arith.constant 0 : index
      %19 = vector.load %arg4[%c0_18, %c0_19] : memref<2x16xf32, #tpu.memory_space<vmem>>, vector<2x16xf32>
      %20 = arith.mulf %19, %19 : vector<2x16xf32>
      %21 = arith.mulf %18, %20 : vector<2x16xf32>
      %22 = tpu.iota {dimensions = array<i32: 1>} : vector<2x16xi32>
      %cst_20 = arith.constant 0.000000e+00 : f32
      %23 = vector.broadcast %cst_20 : f32 to vector<2x1xf32>
      %cst_21 = arith.constant dense<0xFF800000> : vector<2xf32>
      %24 = vector.multi_reduction <maximumf>, %21, %cst_21 [1] : vector<2x16xf32> to vector<2xf32>
      %25 = vector.shape_cast %24 : vector<2xf32> to vector<2x1xf32>
      %26 = arith.addf %23, %25 : vector<2x1xf32>
      %27 = vector.broadcast %25 : vector<2x1xf32> to vector<2x16xf32>
      %28 = arith.cmpf oeq, %21, %27 : vector<2x16xf32>
      %c16_i32 = arith.constant 16 : i32
      %29 = vector.broadcast %c16_i32 : i32 to vector<2x16xi32>
      %30 = arith.select %28, %22, %29 : vector<2x16xi1>, vector<2x16xi32>
      %cst_22 = arith.constant dense<2147483647> : vector<2xi32>
      %31 = vector.multi_reduction <minsi>, %30, %cst_22 [1] : vector<2x16xi32> to vector<2xi32>
      %32 = vector.shape_cast %31 : vector<2xi32> to vector<2x1xi32>
      %33 = vector.broadcast %32 : vector<2x1xi32> to vector<2x16xi32>
      %34 = arith.cmpi eq, %22, %33 : vector<2x16xi32>
      %cst_23 = arith.constant -1.000000e+30 : f32
      %35 = vector.broadcast %cst_23 : f32 to vector<2x16xf32>
      %36 = arith.select %34, %35, %21 : vector<2x16xi1>, vector<2x16xf32>
      %cst_24 = arith.constant dense<0xFF800000> : vector<2xf32>
      %37 = vector.multi_reduction <maximumf>, %36, %cst_24 [1] : vector<2x16xf32> to vector<2xf32>
      %38 = vector.shape_cast %37 : vector<2xf32> to vector<2x1xf32>
      %39 = arith.addf %26, %38 : vector<2x1xf32>
      %40 = vector.broadcast %38 : vector<2x1xf32> to vector<2x16xf32>
      %41 = arith.cmpf oeq, %36, %40 : vector<2x16xf32>
      %c16_i32_25 = arith.constant 16 : i32
      %42 = vector.broadcast %c16_i32_25 : i32 to vector<2x16xi32>
      %43 = arith.select %41, %22, %42 : vector<2x16xi1>, vector<2x16xi32>
      %cst_26 = arith.constant dense<2147483647> : vector<2xi32>
      %44 = vector.multi_reduction <minsi>, %43, %cst_26 [1] : vector<2x16xi32> to vector<2xi32>
      %45 = vector.shape_cast %44 : vector<2xi32> to vector<2x1xi32>
      %46 = vector.broadcast %45 : vector<2x1xi32> to vector<2x16xi32>
      %47 = arith.cmpi eq, %22, %46 : vector<2x16xi32>
      %cst_27 = arith.constant -1.000000e+30 : f32
      %48 = vector.broadcast %cst_27 : f32 to vector<2x16xf32>
      %49 = arith.select %47, %48, %36 : vector<2x16xi1>, vector<2x16xf32>
      %cst_28 = arith.constant dense<0xFF800000> : vector<2xf32>
      %50 = vector.multi_reduction <maximumf>, %49, %cst_28 [1] : vector<2x16xf32> to vector<2xf32>
      %51 = vector.shape_cast %50 : vector<2xf32> to vector<2x1xf32>
      %52 = arith.addf %39, %51 : vector<2x1xf32>
      %53 = vector.broadcast %51 : vector<2x1xf32> to vector<2x16xf32>
      %54 = arith.cmpf oeq, %49, %53 : vector<2x16xf32>
      %c16_i32_29 = arith.constant 16 : i32
      %55 = vector.broadcast %c16_i32_29 : i32 to vector<2x16xi32>
      %56 = arith.select %54, %22, %55 : vector<2x16xi1>, vector<2x16xi32>
      %cst_30 = arith.constant dense<2147483647> : vector<2xi32>
      %57 = vector.multi_reduction <minsi>, %56, %cst_30 [1] : vector<2x16xi32> to vector<2xi32>
      %58 = vector.shape_cast %57 : vector<2xi32> to vector<2x1xi32>
      %59 = vector.broadcast %58 : vector<2x1xi32> to vector<2x16xi32>
      %60 = arith.cmpi eq, %22, %59 : vector<2x16xi32>
      %cst_31 = arith.constant -1.000000e+30 : f32
      %61 = vector.broadcast %cst_31 : f32 to vector<2x16xf32>
      %62 = arith.select %60, %61, %49 : vector<2x16xi1>, vector<2x16xf32>
      %cst_32 = arith.constant dense<0xFF800000> : vector<2xf32>
      %63 = vector.multi_reduction <maximumf>, %62, %cst_32 [1] : vector<2x16xf32> to vector<2xf32>
      %64 = vector.shape_cast %63 : vector<2xf32> to vector<2x1xf32>
      %65 = arith.addf %52, %64 : vector<2x1xf32>
      %66 = vector.broadcast %64 : vector<2x1xf32> to vector<2x16xf32>
      %67 = arith.cmpf oeq, %62, %66 : vector<2x16xf32>
      %c16_i32_33 = arith.constant 16 : i32
      %68 = vector.broadcast %c16_i32_33 : i32 to vector<2x16xi32>
      %69 = arith.select %67, %22, %68 : vector<2x16xi1>, vector<2x16xi32>
      %cst_34 = arith.constant dense<2147483647> : vector<2xi32>
      %70 = vector.multi_reduction <minsi>, %69, %cst_34 [1] : vector<2x16xi32> to vector<2xi32>
      %71 = vector.shape_cast %70 : vector<2xi32> to vector<2x1xi32>
      %72 = vector.broadcast %71 : vector<2x1xi32> to vector<2x16xi32>
      %73 = arith.cmpi eq, %22, %72 : vector<2x16xi32>
      %cst_35 = arith.constant -1.000000e+30 : f32
      %74 = vector.broadcast %cst_35 : f32 to vector<2x16xf32>
      %75 = arith.select %73, %74, %62 : vector<2x16xi1>, vector<2x16xf32>
      %cst_36 = arith.constant dense<0xFF800000> : vector<2xf32>
      %76 = vector.multi_reduction <maximumf>, %75, %cst_36 [1] : vector<2x16xf32> to vector<2xf32>
      %77 = vector.shape_cast %76 : vector<2xf32> to vector<2x1xf32>
      %78 = arith.addf %65, %77 : vector<2x1xf32>
      %79 = vector.broadcast %77 : vector<2x1xf32> to vector<2x16xf32>
      %80 = arith.cmpf oeq, %75, %79 : vector<2x16xf32>
      %c16_i32_37 = arith.constant 16 : i32
      %81 = vector.broadcast %c16_i32_37 : i32 to vector<2x16xi32>
      %82 = arith.select %80, %22, %81 : vector<2x16xi1>, vector<2x16xi32>
      %cst_38 = arith.constant dense<2147483647> : vector<2xi32>
      %83 = vector.multi_reduction <minsi>, %82, %cst_38 [1] : vector<2x16xi32> to vector<2xi32>
      %84 = vector.shape_cast %83 : vector<2xi32> to vector<2x1xi32>
      %85 = vector.broadcast %84 : vector<2x1xi32> to vector<2x16xi32>
      %86 = arith.cmpi eq, %22, %85 : vector<2x16xi32>
      %cst_39 = arith.constant -1.000000e+30 : f32
      %87 = vector.broadcast %cst_39 : f32 to vector<2x16xf32>
      %88 = arith.select %86, %87, %75 : vector<2x16xi1>, vector<2x16xf32>
      %cst_40 = arith.constant dense<0xFF800000> : vector<2xf32>
      %89 = vector.multi_reduction <maximumf>, %88, %cst_40 [1] : vector<2x16xf32> to vector<2xf32>
      %90 = vector.shape_cast %89 : vector<2xf32> to vector<2x1xf32>
      %91 = arith.addf %78, %90 : vector<2x1xf32>
      %92 = vector.broadcast %90 : vector<2x1xf32> to vector<2x16xf32>
      %93 = arith.cmpf oeq, %88, %92 : vector<2x16xf32>
      %c16_i32_41 = arith.constant 16 : i32
      %94 = vector.broadcast %c16_i32_41 : i32 to vector<2x16xi32>
      %95 = arith.select %93, %22, %94 : vector<2x16xi1>, vector<2x16xi32>
      %cst_42 = arith.constant dense<2147483647> : vector<2xi32>
      %96 = vector.multi_reduction <minsi>, %95, %cst_42 [1] : vector<2x16xi32> to vector<2xi32>
      %97 = vector.shape_cast %96 : vector<2xi32> to vector<2x1xi32>
      %98 = vector.broadcast %97 : vector<2x1xi32> to vector<2x16xi32>
      %99 = arith.cmpi eq, %22, %98 : vector<2x16xi32>
      %cst_43 = arith.constant -1.000000e+30 : f32
      %100 = vector.broadcast %cst_43 : f32 to vector<2x16xf32>
      %101 = arith.select %99, %100, %88 : vector<2x16xi1>, vector<2x16xf32>
      %cst_44 = arith.constant dense<0xFF800000> : vector<2xf32>
      %102 = vector.multi_reduction <maximumf>, %101, %cst_44 [1] : vector<2x16xf32> to vector<2xf32>
      %103 = vector.shape_cast %102 : vector<2xf32> to vector<2x1xf32>
      %104 = arith.addf %91, %103 : vector<2x1xf32>
      %105 = vector.broadcast %103 : vector<2x1xf32> to vector<2x16xf32>
      %106 = arith.cmpf oeq, %101, %105 : vector<2x16xf32>
      %c16_i32_45 = arith.constant 16 : i32
      %107 = vector.broadcast %c16_i32_45 : i32 to vector<2x16xi32>
      %108 = arith.select %106, %22, %107 : vector<2x16xi1>, vector<2x16xi32>
      %cst_46 = arith.constant dense<2147483647> : vector<2xi32>
      %109 = vector.multi_reduction <minsi>, %108, %cst_46 [1] : vector<2x16xi32> to vector<2xi32>
      %110 = vector.shape_cast %109 : vector<2xi32> to vector<2x1xi32>
      %111 = vector.broadcast %110 : vector<2x1xi32> to vector<2x16xi32>
      %112 = arith.cmpi eq, %22, %111 : vector<2x16xi32>
      %cst_47 = arith.constant -1.000000e+30 : f32
      %113 = vector.broadcast %cst_47 : f32 to vector<2x16xf32>
      %114 = arith.select %112, %113, %101 : vector<2x16xi1>, vector<2x16xf32>
      %cst_48 = arith.constant dense<0xFF800000> : vector<2xf32>
      %115 = vector.multi_reduction <maximumf>, %114, %cst_48 [1] : vector<2x16xf32> to vector<2xf32>
      %116 = vector.shape_cast %115 : vector<2xf32> to vector<2x1xf32>
      %117 = arith.addf %104, %116 : vector<2x1xf32>
      %cst_49 = arith.constant 1.250000e-01 : f32
      %118 = vector.broadcast %cst_49 : f32 to vector<2x1xf32>
      %119 = arith.mulf %117, %118 : vector<2x1xf32>
      %c0_50 = arith.constant 0 : index
      %c0_51 = arith.constant 0 : index
      %120 = vector.load %arg5[%c0_50, %c0_51] : memref<2x1xf32, #tpu.memory_space<vmem>>, vector<2x1xf32>
      tpu.vector_store %arg5[%c0_50, %c0_51], %119 {strides = array<i32>} : memref<2x1xf32, #tpu.memory_space<vmem>>, vector<2x1xf32>,
    } else {
    }
    return
  }
  func.func @transform_0(%arg0: i32, %arg1: i32) -> (i32, i32, i32) {
    %c0_i32 = arith.constant 0 : i32
    %c0_i32_0 = arith.constant 0 : i32
    return %arg0, %c0_i32, %arg1 : i32, i32, i32
  }
  func.func @transform_1(%arg0: i32, %arg1: i32) -> (i32, i32, i32) {
    %c0_i32 = arith.constant 0 : i32
    %c0_i32_0 = arith.constant 0 : i32
    return %arg0, %c0_i32, %arg1 : i32, i32, i32
  }
  func.func @transform_2(%arg0: i32, %arg1: i32) -> (i32, i32) {
    %c0_i32 = arith.constant 0 : i32
    %c0_i32_0 = arith.constant 0 : i32
    return %arg0, %c0_i32 : i32, i32
  }
  func.func @transform_3(%arg0: i32, %arg1: i32) -> (i32, i32) {
    %c0_i32 = arith.constant 0 : i32
    %c0_i32_0 = arith.constant 0 : i32
    return %arg0, %c0_i32 : i32, i32
  }
}

</mosaic_0001>

<llo_original>
// kernel: tpu_custom_call.1
$region0: #{tpu_custom_call.1}
  #allocation0 [shape = 'u32[]', space=smem, size = 0x4, offset = 0x4, fixed_abs, tag = 'smem constant byte address 0x4 - core index']
  #allocation1 [shape = 'u32[144,128]{1,0:T(1,128)}', space=vmem, size = 0x12000, scoped, tag = 'internal scratch']
  #allocation2 [shape = 'f32[2,16,128]{2,1,0:T(8,128)}', space=vmem, size = 0x4000, scoped, tag = 'scratch operand']
  %s0 = inlined_call_operand.hbm [shape: f32[2,16,256], index: 0, kind: input, shape index: {}]
  %s1 = inlined_call_operand.hbm [shape: f32[2,16,256], index: 1, kind: input, shape index: {}]
  %s2 = inlined_call_operand.vmem [shape: f32[2,16], index: 2, kind: input, shape index: {}]
  %s3 = inlined_call_operand.vmem [shape: f32[2,1], index: 3, kind: output, shape index: {}]
  %s4 = sld [smem:[#allocation0]]
  $region61: #{tpu_custom_call.1} parent=0
    _
  %s6 = ssub.s32 1, %s4
  %s7 = scalar_select 0, %s6, %s4
  $region1: #{tpu_custom_call.1} parent=0
    #allocation3 [shape = 'u8[32768]{0}', space=vmem, size = 0x8000, scoped, tag = 'input window, operand 0']
    #allocation4 [shape = 's32[2]{0}', space=sflag, size = 0x8, scoped, tag = 'scoped memory for tpu_custom_call.1']
    #allocation5 [shape = 'u8[32768]{0}', space=vmem, size = 0x8000, scoped, tag = 'input window, operand 1']
    #allocation6 [shape = 's32[2]{0}', space=sflag, size = 0x8, scoped, tag = 'scoped memory for tpu_custom_call.1']
    %8 = vsyncpa [#allocation4], 0
    %s9 = scalar_lea.sflag [#allocation4], 1
    %10 = vsyncpa %s9, 0
    %11 = vsyncpa [#allocation6], 0
    %s12 = scalar_lea.sflag [#allocation6], 1
    %13 = vsyncpa %s12, 0
    loop: start=0, step=1, limit=4
    $region2: #{tpu_custom_call.1} parent=1 // loop_pre_header
      _
    $region3: #{tpu_custom_call.1} parent=1 // loop_header
      %s15 = sphi 0, %s19
      %p16 = scmp.ge.s32.totalorder %s15, 4
      %s22 = sphi 0, %s34
      %s23 = sphi 0, %s30
      %s24 = sphi 0, %s22
      %s25 = sphi 0, %s23
      %s26 = sphi 0, %s24
      %s27 = sphi 0, %s25
      %s39 = sphi 0, %s41
      %s42 = sphi 0, %s39
      %s43 = sphi 0, %s42
      %s59 = sphi 0, %s43
      %s67 = sphi 0, %s69
      %s70 = sphi 0, %s67
      %s71 = sphi 0, %s70
      %s87 = sphi 0, %s71
      %s93 = sphi 0, %s95
      %s96 = sphi 0, %s93
      %s97 = sphi 0, %s96
      %s113 = sphi 0, %s97
      %s119 = sphi 0, %s121
      %s122 = sphi 0, %s119
      %s123 = sphi 0, %s122
      %s139 = sphi 0, %s123
    $region4: #{tpu_custom_call.1} parent=1 // loop_header_branch
      %18 = sbr.rel (%p16) target = $region8
    $region5: #{tpu_custom_call.1} parent=1 // loop_body
      %s20 = ssub.s32 %s15, 1
      %s21 = ssub.s32 %s15, 2
      %s28 = sadd.s32 1, %s23
      %p29 = scmp.ge.s32.totalorder %s28, 2
      %s30 = scalar_select %p29, 0, %s28
      %s31 = sadd.s32 1, %s22
      %s32 = scalar_select %p29, %s31, %s22
      %p33 = scmp.ge.s32.totalorder %s32, 1
      %s34 = scalar_select %p33, 0, %s32
      %s35 = ssub.s32 %s22, %s34
      %s36 = ssub.s32 %s23, %s30
      %s37 = sor.u32 %s35, %s36
      %p38 = scmp.eq.s32.totalorder %s37, 0
      %s40 = sadd.s32 %s39, 1
      %s41 = scalar_select %p38, %s39, %s40
      %p44 = pneg %p38
      %p45 = scmp.eq.s32.totalorder %s15, 1
      %p46 = por %p44, %p45
      %p47 = scmp.ne.s32.totalorder %s39, %s42
      %p48 = scmp.eq.s32.totalorder %s15, 0
      %p49 = por %p47, %p48
      %p50 = scmp.ne.s32.totalorder %s39, %s42
      %p51 = scmp.eq.s32.totalorder %s20, 1
      %p52 = por %p50, %p51
      %p53 = scmp.ne.s32.totalorder %s42, %s43
      %p54 = scmp.eq.s32.totalorder %s20, 0
      %p55 = por %p53, %p54
      %p56 = scmp.ne.s32.totalorder %s42, %s43
      %p57 = scmp.eq.s32.totalorder %s21, 1
      %p58 = por %p56, %p57
      %p60 = scmp.ne.s32.totalorder %s43, %s59
      %p61 = scmp.eq.s32.totalorder %s21, 0
      %p62 = por %p60, %p61
      %s63 = ssub.s32 %s22, %s34
      %s64 = ssub.s32 %s23, %s30
      %s65 = sor.u32 %s63, %s64
      %p66 = scmp.eq.s32.totalorder %s65, 0
      %s68 = sadd.s32 %s67, 1
      %s69 = scalar_select %p66, %s67, %s68
      %p72 = pneg %p66
      %p73 = scmp.eq.s32.totalorder %s15, 1
      %p74 = por %p72, %p73
      %p75 = scmp.ne.s32.totalorder %s67, %s70
      %p76 = scmp.eq.s32.totalorder %s15, 0
      %p77 = por %p75, %p76
      %p78 = scmp.ne.s32.totalorder %s67, %s70
      %p79 = scmp.eq.s32.totalorder %s20, 1
      %p80 = por %p78, %p79
      %p81 = scmp.ne.s32.totalorder %s70, %s71
      %p82 = scmp.eq.s32.totalorder %s20, 0
      %p83 = por %p81, %p82
      %p84 = scmp.ne.s32.totalorder %s70, %s71
      %p85 = scmp.eq.s32.totalorder %s21, 1
      %p86 = por %p84, %p85
      %p88 = scmp.ne.s32.totalorder %s71, %s87
      %p89 = scmp.eq.s32.totalorder %s21, 0
      %p90 = por %p88, %p89
      %s91 = ssub.s32 %s22, %s34
      %p92 = scmp.eq.s32.totalorder %s91, 0
      %s94 = sadd.s32 %s93, 1
      %s95 = scalar_select %p92, %s93, %s94
      %p98 = pneg %p92
      %p99 = scmp.eq.s32.totalorder %s15, 1
      %p100 = por %p98, %p99
      %p101 = scmp.ne.s32.totalorder %s93, %s96
      %p102 = scmp.eq.s32.totalorder %s15, 0
      %p103 = por %p101, %p102
      %p104 = scmp.ne.s32.totalorder %s93, %s96
      %p105 = scmp.eq.s32.totalorder %s20, 1
      %p106 = por %p104, %p105
      %p107 = scmp.ne.s32.totalorder %s96, %s97
      %p108 = scmp.eq.s32.totalorder %s20, 0
      %p109 = por %p107, %p108
      %p110 = scmp.ne.s32.totalorder %s96, %s97
      %p111 = scmp.eq.s32.totalorder %s21, 1
      %p112 = por %p110, %p111
      %p114 = scmp.ne.s32.totalorder %s97, %s113
      %p115 = scmp.eq.s32.totalorder %s21, 0
      %p116 = por %p114, %p115
      %s117 = ssub.s32 %s22, %s34
      %p118 = scmp.eq.s32.totalorder %s117, 0
      %s120 = sadd.s32 %s119, 1
      %s121 = scalar_select %p118, %s119, %s120
      %p124 = pneg %p118
      %p125 = scmp.eq.s32.totalorder %s15, 1
      %p126 = por %p124, %p125
      %p127 = scmp.ne.s32.totalorder %s119, %s122
      %p128 = scmp.eq.s32.totalorder %s15, 0
      %p129 = por %p127, %p128
      %p130 = scmp.ne.s32.totalorder %s119, %s122
      %p131 = scmp.eq.s32.totalorder %s20, 1
      %p132 = por %p130, %p131
      %p133 = scmp.ne.s32.totalorder %s122, %s123
      %p134 = scmp.eq.s32.totalorder %s20, 0
      %p135 = por %p133, %p134
      %p136 = scmp.ne.s32.totalorder %s122, %s123
      %p137 = scmp.eq.s32.totalorder %s21, 1
      %p138 = por %p136, %p137
      %p140 = scmp.ne.s32.totalorder %s123, %s139
      %p141 = scmp.eq.s32.totalorder %s21, 0
      %p142 = por %p140, %p141
      %p143 = scmp.le.s32.totalorder 1, %s15
      %p144 = scmp.lt.s32.totalorder %s15, 3
      %p145 = pnand %p143, %p144
      %p146 = pneg %p145
      // Predicated region
      $region9: #{tpu_custom_call.1} parent=5 // pred_check
        _
      $region10: #{tpu_custom_call.1} parent=5 // pred_check_branch
        %148 = sbr.rel (%p145) target = $region12
      $region11: #{tpu_custom_call.1} parent=5 // pred_region
        %s149 = ssub.s32 %s15, 1
        // Predicated region
        $region13: #{tpu_custom_call.1} parent=11 // pred_check
          %p150 = pneg %p109
        $region14: #{tpu_custom_call.1} parent=11 // pred_check_branch
          %152 = sbr.rel (%p150) target = $region16
        $region15: #{tpu_custom_call.1} parent=11 // pred_region
          %p153 = scmp.lt.s32.totalorder %s24, 0
          %s154 = scalar_select %p153, %s24, 0
          %s155 = smul.addr %s154, 2
          %s156 = scalar_lea.vmem %s2, %s155
        $region16: #{tpu_custom_call.1} parent=11 // pred_fallthru
          _
      $region12: #{tpu_custom_call.1} parent=5 // pred_fallthru
        _
      %p157 = scmp.lt.s32.totalorder %s15, 2
      // Predicated region
      $region17: #{tpu_custom_call.1} parent=5 // pred_check
        %p158 = pneg %p157
      $region18: #{tpu_custom_call.1} parent=5 // pred_check_branch
        %160 = sbr.rel (%p158) target = $region20
      $region19: #{tpu_custom_call.1} parent=5 // pred_region
        // Predicated region
        $region21: #{tpu_custom_call.1} parent=19 // pred_check
          %p161 = pneg %p49
        $region22: #{tpu_custom_call.1} parent=19 // pred_check_branch
          %163 = sbr.rel (%p161) target = $region24
        $region23: #{tpu_custom_call.1} parent=19 // pred_region
          %s164 = sand.u32 %s39, 1
          %s165 = scalar_lea.sflag [#allocation4], %s164
          %s166 = sand.u32 %s39, 1
          %s167 = smul.addr %s166, 32
          %s168 = scalar_lea.vmem [#allocation3], %s167
          %s169 = smul.u32 2, %s22
          %s171 = ssub.s32 512, 512
          %172 = vsyncadd %s165, %s171
          %s173 = smul.addr %s169, 4
          %s174 = sadd.s32 %s23, %s173
          %s175 = smul.addr %s174, 128
          %s176 = scalar_lea.hbm %s0, %s175
          %s177 = sshll.u32 %s168, 4
          %s178 = int_to_ptr.vmem [resolvable:$true] %s177
          %183 = dma.hbm_to_vmem [thread:$0]  %s176, 512, %s178, %s165, 256, 128, 8
        $region24: #{tpu_custom_call.1} parent=19 // pred_fallthru
          _
        // Predicated region
        $region25: #{tpu_custom_call.1} parent=19 // pred_check
          %p184 = pneg %p77
        $region26: #{tpu_custom_call.1} parent=19 // pred_check_branch
          %186 = sbr.rel (%p184) target = $region28
        $region27: #{tpu_custom_call.1} parent=19 // pred_region
          %s187 = sand.u32 %s67, 1
          %s188 = scalar_lea.sflag [#allocation6], %s187
          %s189 = sand.u32 %s67, 1
          %s190 = smul.addr %s189, 32
          %s191 = scalar_lea.vmem [#allocation5], %s190
          %s192 = smul.u32 2, %s22
          %s194 = ssub.s32 512, 512
          %195 = vsyncadd %s188, %s194
          %s196 = smul.addr %s192, 4
          %s197 = sadd.s32 %s23, %s196
          %s198 = smul.addr %s197, 128
          %s199 = scalar_lea.hbm %s1, %s198
          %s200 = sshll.u32 %s191, 4
          %s201 = int_to_ptr.vmem [resolvable:$true] %s200
          %206 = dma.hbm_to_vmem [thread:$0]  %s199, 512, %s201, %s188, 256, 128, 8
        $region28: #{tpu_custom_call.1} parent=19 // pred_fallthru
          _
      $region20: #{tpu_custom_call.1} parent=5 // pred_fallthru
        _
      %p207 = scmp.le.s32.totalorder 1, %s15
      %p208 = scmp.lt.s32.totalorder %s15, 3
      %p209 = pnand %p207, %p208
      %p210 = pneg %p209
      // Predicated region
      $region29: #{tpu_custom_call.1} parent=5 // pred_check
        _
      $region30: #{tpu_custom_call.1} parent=5 // pred_check_branch
        %212 = sbr.rel (%p209) target = $region32
      $region31: #{tpu_custom_call.1} parent=5 // pred_region
        %s213 = ssub.s32 %s15, 1
        %s214 = sand.u32 %s42, 1
        %s215 = scalar_lea.sflag [#allocation4], %s214
        %s216 = sand.u32 %s42, 1
        %s217 = smul.addr %s216, 32
        %s218 = scalar_lea.vmem [#allocation3], %s217
        // Predicated region
        $region33: #{tpu_custom_call.1} parent=31 // pred_check
          %p219 = pneg %p55
        $region34: #{tpu_custom_call.1} parent=31 // pred_check_branch
          %221 = sbr.rel (%p219) target = $region36
        $region35: #{tpu_custom_call.1} parent=31 // pred_region
          %222 = dma.done %s215, 512
        $region36: #{tpu_custom_call.1} parent=31 // pred_fallthru
          _
        %s223 = sand.u32 %s70, 1
        %s224 = scalar_lea.sflag [#allocation6], %s223
        %s225 = sand.u32 %s70, 1
        %s226 = smul.addr %s225, 32
        %s227 = scalar_lea.vmem [#allocation5], %s226
        // Predicated region
        $region37: #{tpu_custom_call.1} parent=31 // pred_check
          %p228 = pneg %p83
        $region38: #{tpu_custom_call.1} parent=31 // pred_check_branch
          %230 = sbr.rel (%p228) target = $region40
        $region39: #{tpu_custom_call.1} parent=31 // pred_region
          %231 = dma.done %s224, 512
        $region40: #{tpu_custom_call.1} parent=31 // pred_fallthru
          _
        %s232 = sand.u32 %s42, 1
        %s233 = scalar_lea.sflag [#allocation4], %s232
        %s234 = sand.u32 %s42, 1
        %s235 = smul.addr %s234, 32
        %s236 = scalar_lea.vmem [#allocation3], %s235
        %p237 = pneg %p55
        %p238 = pneg %p52
        %s239 = sand.u32 %s70, 1
        %s240 = scalar_lea.sflag [#allocation6], %s239
        %s241 = sand.u32 %s70, 1
        %s242 = smul.addr %s241, 32
        %s243 = scalar_lea.vmem [#allocation5], %s242
        %p244 = pneg %p83
        %p245 = pneg %p80
        %p246 = scmp.lt.s32.totalorder %s24, 0
        %s247 = scalar_select %p246, %s24, 0
        %s248 = smul.addr %s247, 2
        %s249 = scalar_lea.vmem %s2, %s248
        %p250 = pneg %p109
        %p251 = pneg %p106
        %p252 = pneg %p135
        %p253 = pneg %p132
        %p254 = scmp.lt.s32.totalorder %s24, 0
        %s255 = scalar_select %p254, %s24, 0
        %s256 = smul.addr %s255, 2
        %s257 = scalar_lea.vmem %s3, %s256
        %s258 = smul.u32 2, %s24
        %s259 = smul.u32 2, %s24
        %p260 = scmp.lt.s32.totalorder %s24, 0
        %s261 = scalar_select %p260, %s24, 0
        %s262 = smul.addr %s261, 2
        %s263 = scalar_lea.vmem %s2, %s262
        %p264 = scmp.lt.s32.totalorder %s24, 0
        %s265 = scalar_select %p264, %s24, 0
        %s266 = smul.addr %s265, 2
        %s267 = scalar_lea.vmem %s3, %s266
        %p268 = scmp.eq.s32.totalorder %s25, 0
        // Predicated region
        $region41: #{tpu_custom_call.1} parent=31 // pred_check
          %p269 = pneg %p268
        $region42: #{tpu_custom_call.1} parent=31 // pred_check_branch
          %271 = sbr.rel (%p269) target = $region44
        $region43: #{tpu_custom_call.1} parent=31 // pred_region
          %272 = vst [vmem:[#allocation2] sm:$0xff] 0.0
          %273 = vst [vmem:[#allocation2 + $0x8] sm:$0xff] 0.0
          %274 = vst [vmem:[#allocation2 + $0x10] sm:$0xff] 0.0
          %275 = vst [vmem:[#allocation2 + $0x18] sm:$0xff] 0.0
        $region44: #{tpu_custom_call.1} parent=31 // pred_fallthru
          _
        %v276 = vld [vmem:[%s218] sm:$0xff]
        %v277 = vld [vmem:[%s218 + $0x8] sm:$0xff]
        %v278 = vld [vmem:[%s218 + $0x10] sm:$0xff]
        %v279 = vld [vmem:[%s218 + $0x18] sm:$0xff]
        %v280 = vld [vmem:[%s227] sm:$0xff]
        %v281 = vld [vmem:[%s227 + $0x8] sm:$0xff]
        %v282 = vld [vmem:[%s227 + $0x10] sm:$0xff]
        %v283 = vld [vmem:[%s227 + $0x18] sm:$0xff]
        %v284 = vsub.f32 %v276, %v280
        %v285 = vsub.f32 %v277, %v281
        %v286 = vsub.f32 %v278, %v282
        %v287 = vsub.f32 %v279, %v283
        %v288 = vmul.f32 %v284, %v284
        %v289 = vmul.f32 %v285, %v285
        %v290 = vmul.f32 %v286, %v286
        %v291 = vmul.f32 %v287, %v287
        %v292 = vadd.f32 %v288, 0.0
        %v293 = vadd.f32 %v289, 0.0
        %v294 = vadd.f32 %v290, 0.0
        %v295 = vadd.f32 %v291, 0.0
        %v296 = vld [vmem:[#allocation2] sm:$0xff]
        %v297 = vld [vmem:[#allocation2 + $0x8] sm:$0xff]
        %v298 = vld [vmem:[#allocation2 + $0x10] sm:$0xff]
        %v299 = vld [vmem:[#allocation2 + $0x18] sm:$0xff]
        %v300 = vadd.f32 %v296, %v292
        %v301 = vadd.f32 %v297, %v293
        %v302 = vadd.f32 %v298, %v294
        %v303 = vadd.f32 %v299, %v295
        %304 = vst [vmem:[#allocation2] sm:$0xff] %v300
        %305 = vst [vmem:[#allocation2 + $0x8] sm:$0xff] %v301
        %306 = vst [vmem:[#allocation2 + $0x10] sm:$0xff] %v302
        %307 = vst [vmem:[#allocation2 + $0x18] sm:$0xff] %v303
        %p308 = scmp.eq.s32.totalorder %s25, 1
        // Predicated region
        $region45: #{tpu_custom_call.1} parent=31 // pred_check
          %p309 = pneg %p308
        $region46: #{tpu_custom_call.1} parent=31 // pred_check_branch
          %311 = sbr.rel (%p309) target = $region48
        $region47: #{tpu_custom_call.1} parent=31 // pred_region
          %v312 = vld [vmem:[#allocation2] sm:$0xff]
          %v313 = vld [vmem:[#allocation2 + $0x8] sm:$0xff]
          %v314 = vld [vmem:[#allocation2 + $0x10] sm:$0xff]
          %v315 = vld [vmem:[#allocation2 + $0x18] sm:$0xff]
          %316 = vadd.xlane.f32.xlu0 %v312
          %v317 = vpop.xlane.xlu0 %316
          %318 = vadd.xlane.f32.xlu0 %v313
          %v319 = vpop.xlane.xlu0 %318
          %320 = vadd.xlane.f32.xlu0 %v314
          %v321 = vpop.xlane.xlu0 %320
          %322 = vadd.xlane.f32.xlu0 %v315
          %v323 = vpop.xlane.xlu0 %322
          %v324 = vmul.f32 %v317, 0.001953125
          %v325 = vmul.f32 %v319, 0.001953125
          %v326 = vmul.f32 %v321, 0.001953125
          %v327 = vmul.f32 %v323, 0.001953125
          %v328 = vld [vmem:[%s263] sm:$0x3]
          %v329 = vmul.f32 %v328, %v328
          %v331 = vlaneseq
          %v332 = vshrl.u32 %v331, 7
          %v333 = vsub.s32 0, %v332
          %v334 = vrot.slane %v329, %v333
          %336 = vbcast.lane.b32.xlu0 %v334, 256
          %v337 = vpop.permute.xlu0 %336
          %s339 = sor.u32 256, 8
          %340 = vbcast.lane.b32.xlu0 %v334, %s339
          %v341 = vpop.permute.xlu0 %340
          %v342 = vlaneseq
          %v343 = vshrl.u32 %v342, 7
          %v344 = vsub.s32 1, %v343
          %v345 = vrot.slane %v329, %v344
          %347 = vbcast.lane.b32.xlu0 %v345, 256
          %v348 = vpop.permute.xlu0 %347
          %s350 = sor.u32 256, 8
          %351 = vbcast.lane.b32.xlu0 %v345, %s350
          %v352 = vpop.permute.xlu0 %351
          %v357 = vmul.f32 %v324, %v337
          %v358 = vmul.f32 %v325, %v341
          %v359 = vmul.f32 %v326, %v348
          %v360 = vmul.f32 %v327, %v352
          %v361 = vlaneseq
          %v362 = vand.u32 %v361, 127
          %367 = vset.pattern.permute.xlu0 0
          %368 = vperm.xlu0 %367, %v357
          %v369 = vpop.permute.xlu0 %368
          %370 = vset.pattern.permute.xlu0 0
          %371 = vperm.xlu0 %370, %v358
          %v372 = vpop.permute.xlu0 %371
          %373 = vset.pattern.permute.xlu0 0
          %374 = vperm.xlu0 %373, %v359
          %v375 = vpop.permute.xlu0 %374
          %376 = vset.pattern.permute.xlu0 0
          %377 = vperm.xlu0 %376, %v360
          %v378 = vpop.permute.xlu0 %377
          %v379 = vlaneseq
          %v380 = vshrl.u32 %v379, 7
          %v381 = vsub.s32 %v362, %v380
          %v382 = vrot.slane %v369, %v381
          %v383 = vadd.s32 %v362, 4294967288
          %v384 = vlaneseq
          %v385 = vshrl.u32 %v384, 7
          %v386 = vsub.s32 %v383, %v385
          %v387 = vrot.slane %v372, %v386
          %vm388 = vcmask 130112
          %v389 = vsel %vm388, %v387, %v382
          %v390 = vlaneseq
          %v391 = vshrl.u32 %v390, 7
          %v392 = vsub.s32 %v362, %v391
          %v393 = vrot.slane %v375, %v392
          %v394 = vlaneseq
          %v395 = vshrl.u32 %v394, 7
          %v396 = vsub.s32 %v383, %v395
          %v397 = vrot.slane %v378, %v396
          %v398 = vsel %vm388, %v397, %v393
          %vm399 = vcmask 1041409
          %v400 = vsel %vm399, %v398, %v389
          %vm402 = vcmask 123904
          %v403 = vsel %vm402, %v400, -inf
          %404 = vmax.xlane.f32.xlu0 %v403
          %v405 = vpop.xlane.xlu0 %404
          %v406 = vadd.f32 %v405, 0.0
          %v408 = vlaneseq
          %v409 = vshrl.u32 %v408, 7
          %v410 = vsub.s32 0, %v409
          %v411 = vrot.slane %v405, %v410
          %v412 = vlaneseq
          %v413 = vshrl.u32 %v412, 7
          %v414 = vsub.s32 1, %v413
          %v415 = vrot.slane %v405, %v414
          %vm418 = vcmp.eq.f32.partialorder %v357, %v411
          %vm419 = vcmp.eq.f32.partialorder %v358, %v411
          %vm420 = vcmp.eq.f32.partialorder %v359, %v415
          %vm421 = vcmp.eq.f32.partialorder %v360, %v415
          %423 = vbcast.lane.b32.xlu0 %v362, 256
          %v424 = vpop.permute.xlu0 %423
          %s426 = sor.u32 256, 8
          %427 = vbcast.lane.b32.xlu0 %v362, %s426
          %v428 = vpop.permute.xlu0 %427
          %v429 = vsel %vm418, %v424, 16
          %v430 = vsel %vm419, %v428, 16
          %v431 = vsel %vm420, %v424, 16
          %v432 = vsel %vm421, %v428, 16
          %433 = vset.pattern.permute.xlu0 0
          %434 = vperm.xlu0 %433, %v429
          %v435 = vpop.permute.xlu0 %434
          %436 = vset.pattern.permute.xlu0 0
          %437 = vperm.xlu0 %436, %v430
          %v438 = vpop.permute.xlu0 %437
          %439 = vset.pattern.permute.xlu0 0
          %440 = vperm.xlu0 %439, %v431
          %v441 = vpop.permute.xlu0 %440
          %442 = vset.pattern.permute.xlu0 0
          %443 = vperm.xlu0 %442, %v432
          %v444 = vpop.permute.xlu0 %443
          %v445 = vlaneseq
          %v446 = vshrl.u32 %v445, 7
          %v447 = vsub.s32 %v362, %v446
          %v448 = vrot.slane %v435, %v447
          %v449 = vlaneseq
          %v450 = vshrl.u32 %v449, 7
          %v451 = vsub.s32 %v383, %v450
          %v452 = vrot.slane %v438, %v451
          %v453 = vsel %vm388, %v452, %v448
          %v454 = vlaneseq
          %v455 = vshrl.u32 %v454, 7
          %v456 = vsub.s32 %v362, %v455
          %v457 = vrot.slane %v441, %v456
          %v458 = vlaneseq
          %v459 = vshrl.u32 %v458, 7
          %v460 = vsub.s32 %v383, %v459
          %v461 = vrot.slane %v444, %v460
          %v462 = vsel %vm388, %v461, %v457
          %v463 = vsel %vm399, %v462, %v453
          %v464 = vsel %vm402, %v463, 2147483647
          %v465 = vand.u32 %v464, 65535
          %v466 = vshra.s32 %v464, 16
          %v467 = vcvt.s32.f32 %v465
          %v468 = vcvt.s32.f32 %v466
          %469 = vmin.xlane.f32.xlu0 %v468
          %v470 = vpop.xlane.xlu0 %469
          %vm471 = vcmp.eq.f32.partialorder %v468, %v470
          %v472 = vsel %vm471, %v467, inf
          %473 = vmin.xlane.f32.xlu0 %v472
          %v474 = vpop.xlane.xlu0 %473
          %v475 = vcvt.f32.s32 %v474
          %v476 = vcvt.f32.s32 %v470
          %v477 = vshll.u32 %v476, 16
          %v478 = vadd.s32 %v477, %v475
          %vm479 = vcmp.eq.s32.totalorder %v362, %v478
          %v480 = vsel %vm479, -1e+30, %v400
          %v481 = vsel %vm402, %v480, -inf
          %482 = vmax.xlane.f32.xlu0 %v481
          %v483 = vpop.xlane.xlu0 %482
          %v484 = vadd.f32 %v406, %v483
          %vm485 = vcmp.eq.f32.partialorder %v480, %v483
          %v486 = vsel %vm485, %v362, 16
          %v487 = vsel %vm402, %v486, 2147483647
          %v488 = vand.u32 %v487, 65535
          %v489 = vshra.s32 %v487, 16
          %v490 = vcvt.s32.f32 %v488
          %v491 = vcvt.s32.f32 %v489
          %492 = vmin.xlane.f32.xlu0 %v491
          %v493 = vpop.xlane.xlu0 %492
          %vm494 = vcmp.eq.f32.partialorder %v491, %v493
          %v495 = vsel %vm494, %v490, inf
          %496 = vmin.xlane.f32.xlu0 %v495
          %v497 = vpop.xlane.xlu0 %496
          %v498 = vcvt.f32.s32 %v497
          %v499 = vcvt.f32.s32 %v493
          %v500 = vshll.u32 %v499, 16
          %v501 = vadd.s32 %v500, %v498
          %vm502 = vcmp.eq.s32.totalorder %v362, %v501
          %v503 = vsel %vm502, -1e+30, %v480
          %v504 = vsel %vm402, %v503, -inf
          %505 = vmax.xlane.f32.xlu0 %v504
          %v506 = vpop.xlane.xlu0 %505
          %v507 = vadd.f32 %v484, %v506
          %vm508 = vcmp.eq.f32.partialorder %v503, %v506
          %v509 = vsel %vm508, %v362, 16
          %v510 = vsel %vm402, %v509, 2147483647
          %v511 = vand.u32 %v510, 65535
          %v512 = vshra.s32 %v510, 16
          %v513 = vcvt.s32.f32 %v511
          %v514 = vcvt.s32.f32 %v512
          %515 = vmin.xlane.f32.xlu0 %v514
          %v516 = vpop.xlane.xlu0 %515
          %vm517 = vcmp.eq.f32.partialorder %v514, %v516
          %v518 = vsel %vm517, %v513, inf
          %519 = vmin.xlane.f32.xlu0 %v518
          %v520 = vpop.xlane.xlu0 %519
          %v521 = vcvt.f32.s32 %v520
          %v522 = vcvt.f32.s32 %v516
          %v523 = vshll.u32 %v522, 16
          %v524 = vadd.s32 %v523, %v521
          %vm525 = vcmp.eq.s32.totalorder %v362, %v524
          %v526 = vsel %vm525, -1e+30, %v503
          %v527 = vsel %vm402, %v526, -inf
          %528 = vmax.xlane.f32.xlu0 %v527
          %v529 = vpop.xlane.xlu0 %528
          %v530 = vadd.f32 %v507, %v529
          %vm531 = vcmp.eq.f32.partialorder %v526, %v529
          %v532 = vsel %vm531, %v362, 16
          %v533 = vsel %vm402, %v532, 2147483647
          %v534 = vand.u32 %v533, 65535
          %v535 = vshra.s32 %v533, 16
          %v536 = vcvt.s32.f32 %v534
          %v537 = vcvt.s32.f32 %v535
          %538 = vmin.xlane.f32.xlu0 %v537
          %v539 = vpop.xlane.xlu0 %538
          %vm540 = vcmp.eq.f32.partialorder %v537, %v539
          %v541 = vsel %vm540, %v536, inf
          %542 = vmin.xlane.f32.xlu0 %v541
          %v543 = vpop.xlane.xlu0 %542
          %v544 = vcvt.f32.s32 %v543
          %v545 = vcvt.f32.s32 %v539
          %v546 = vshll.u32 %v545, 16
          %v547 = vadd.s32 %v546, %v544
          %vm548 = vcmp.eq.s32.totalorder %v362, %v547
          %v549 = vsel %vm548, -1e+30, %v526
          %v550 = vsel %vm402, %v549, -inf
          %551 = vmax.xlane.f32.xlu0 %v550
          %v552 = vpop.xlane.xlu0 %551
          %v553 = vadd.f32 %v530, %v552
          %vm554 = vcmp.eq.f32.partialorder %v549, %v552
          %v555 = vsel %vm554, %v362, 16
          %v556 = vsel %vm402, %v555, 2147483647
          %v557 = vand.u32 %v556, 65535
          %v558 = vshra.s32 %v556, 16
          %v559 = vcvt.s32.f32 %v557
          %v560 = vcvt.s32.f32 %v558
          %561 = vmin.xlane.f32.xlu0 %v560
          %v562 = vpop.xlane.xlu0 %561
          %vm563 = vcmp.eq.f32.partialorder %v560, %v562
          %v564 = vsel %vm563, %v559, inf
          %565 = vmin.xlane.f32.xlu0 %v564
          %v566 = vpop.xlane.xlu0 %565
          %v567 = vcvt.f32.s32 %v566
          %v568 = vcvt.f32.s32 %v562
          %v569 = vshll.u32 %v568, 16
          %v570 = vadd.s32 %v569, %v567
          %vm571 = vcmp.eq.s32.totalorder %v362, %v570
          %v572 = vsel %vm571, -1e+30, %v549
          %v573 = vsel %vm402, %v572, -inf
          %574 = vmax.xlane.f32.xlu0 %v573
          %v575 = vpop.xlane.xlu0 %574
          %v576 = vadd.f32 %v553, %v575
          %vm577 = vcmp.eq.f32.partialorder %v572, %v575
          %v578 = vsel %vm577, %v362, 16
          %v579 = vsel %vm402, %v578, 2147483647
          %v580 = vand.u32 %v579, 65535
          %v581 = vshra.s32 %v579, 16
          %v582 = vcvt.s32.f32 %v580
          %v583 = vcvt.s32.f32 %v581
          %584 = vmin.xlane.f32.xlu0 %v583
          %v585 = vpop.xlane.xlu0 %584
          %vm586 = vcmp.eq.f32.partialorder %v583, %v585
          %v587 = vsel %vm586, %v582, inf
          %588 = vmin.xlane.f32.xlu0 %v587
          %v589 = vpop.xlane.xlu0 %588
          %v590 = vcvt.f32.s32 %v589
          %v591 = vcvt.f32.s32 %v585
          %v592 = vshll.u32 %v591, 16
          %v593 = vadd.s32 %v592, %v590
          %vm594 = vcmp.eq.s32.totalorder %v362, %v593
          %v595 = vsel %vm594, -1e+30, %v572
          %v596 = vsel %vm402, %v595, -inf
          %597 = vmax.xlane.f32.xlu0 %v596
          %v598 = vpop.xlane.xlu0 %597
          %v599 = vadd.f32 %v576, %v598
          %vm600 = vcmp.eq.f32.partialorder %v595, %v598
          %v601 = vsel %vm600, %v362, 16
          %v602 = vsel %vm402, %v601, 2147483647
          %v603 = vand.u32 %v602, 65535
          %v604 = vshra.s32 %v602, 16
          %v605 = vcvt.s32.f32 %v603
          %v606 = vcvt.s32.f32 %v604
          %607 = vmin.xlane.f32.xlu0 %v606
          %v608 = vpop.xlane.xlu0 %607
          %vm609 = vcmp.eq.f32.partialorder %v606, %v608
          %v610 = vsel %vm609, %v605, inf
          %611 = vmin.xlane.f32.xlu0 %v610
          %v612 = vpop.xlane.xlu0 %611
          %v613 = vcvt.f32.s32 %v612
          %v614 = vcvt.f32.s32 %v608
          %v615 = vshll.u32 %v614, 16
          %v616 = vadd.s32 %v615, %v613
          %vm617 = vcmp.eq.s32.totalorder %v362, %v616
          %v618 = vsel %vm617, -1e+30, %v595
          %v619 = vsel %vm402, %v618, -inf
          %620 = vmax.xlane.f32.xlu0 %v619
          %v621 = vpop.xlane.xlu0 %620
          %v622 = vadd.f32 %v599, %v621
          %v623 = vmul.f32 %v622, 0.125
          %vm624 = vcmask 1024
          %625 = vst.msk [vmem:[%s267] sm:$0x3] %vm624, %v623
        $region48: #{tpu_custom_call.1} parent=31 // pred_fallthru
          _
        %p626 = scmp.lt.s32.totalorder %s24, 0
        %s627 = scalar_select %p626, %s24, 0
        %s628 = smul.addr %s627, 2
        %s629 = scalar_lea.vmem %s3, %s628
        // Predicated region
        $region49: #{tpu_custom_call.1} parent=31 // pred_check
          %p630 = pneg %p132
        $region50: #{tpu_custom_call.1} parent=31 // pred_check_branch
          %632 = sbr.rel (%p630) target = $region52
        $region51: #{tpu_custom_call.1} parent=31 // pred_region
          _
        $region52: #{tpu_custom_call.1} parent=31 // pred_fallthru
          _
        // Predicated region
        $region53: #{tpu_custom_call.1} parent=31 // pred_check
          %p633 = pneg %p132
        $region54: #{tpu_custom_call.1} parent=31 // pred_check_branch
          %635 = sbr.rel (%p633) target = $region56
        $region55: #{tpu_custom_call.1} parent=31 // pred_region
          %p636 = scmp.lt.s32.totalorder %s24, 0
          %s637 = scalar_select %p636, %s24, 0
          %s638 = smul.addr %s637, 2
          %s639 = scalar_lea.vmem %s3, %s638
        $region56: #{tpu_custom_call.1} parent=31 // pred_fallthru
          _
      $region32: #{tpu_custom_call.1} parent=5 // pred_fallthru
        _
      %p640 = scmp.le.s32.totalorder 2, %s15
      // Predicated region
      $region57: #{tpu_custom_call.1} parent=5 // pred_check
        %p641 = pneg %p640
      $region58: #{tpu_custom_call.1} parent=5 // pred_check_branch
        %643 = sbr.rel (%p641) target = $region60
      $region59: #{tpu_custom_call.1} parent=5 // pred_region
        %s644 = ssub.s32 %s15, 2
      $region60: #{tpu_custom_call.1} parent=5 // pred_fallthru
        _
    $region6: #{tpu_custom_call.1} parent=1 // loop_footer
      %s19 = sadd.s32 1, %s15
    $region7: #{tpu_custom_call.1} parent=1 // loop_footer_branch
      %14 = sbr.rel target = $region3
    $region8: #{tpu_custom_call.1} parent=1 // loop_exit
      _
    %645 = vsyncpa [#allocation4], 1
    %s646 = scalar_lea.sflag [#allocation4], 1
    %647 = vsyncpa %s646, 1
    %648 = vsyncpa [#allocation6], 1
    %s649 = scalar_lea.sflag [#allocation6], 1
    %650 = vsyncpa %s649, 1

</llo_original>
